<compile_context>
chip_gen: v7x
topology: tpu7x:2x2x1
jax: 0.10.0
libtpu: 0.0.40
codegen_flags: <defaults>
</compile_context>

<pallas_src>
import jax
import jax.numpy as jnp
from jax.experimental import pallas as pl
from jax.experimental.pallas import tpu as pltpu


# Per-stream f32 block budget (~1 MiB): 4 streams x 2 buffers -> ~8 MiB pipeline,
# comfortably inside scoped VMEM on every TPU generation.
_BLOCK_BUDGET_BYTES = 1 << 20


def _norm_kernel(ma_ref, sa_ref, mb_ref, sb_ref, xa_ref, xb_ref, ya_ref, yb_ref):
    """y = (x - mean) * inv_std for both halves; one load + one store per half."""
    xa = xa_ref[...].astype(jnp.float32)
    xb = xb_ref[...].astype(jnp.float32)
    ya_ref[...] = ((xa - ma_ref[...]) * sa_ref[...]).astype(ya_ref.dtype)
    yb_ref[...] = ((xb - mb_ref[...]) * sb_ref[...]).astype(yb_ref.dtype)


def _apply_norm(x_a, x_b, mean_a, inv_a, mean_b, inv_b):
    """(x - mean) * inv_std with per-sample, per-channel mean / inv_std.

    x_a / x_b: (B, C, H, W).  mean_* / inv_*: (B, C) float32.
    """
    B, C, H, W = x_a.shape
    hw = H * W
    dtype_a, dtype_b = x_a.dtype, x_b.dtype

    if hw % 128 == 0:
        # Sublane-dense layout: fold (C, H*W) -> (C*hw/128, 128) rows x lanes
        # (free view).  Per-channel vectors expanded to per-row vectors (tiny).
        rows_per_c = hw // 128
        M = C * rows_per_c
        xa = x_a.reshape(B, M, 128)
        xb = x_b.reshape(B, M, 128)
        ma = jnp.repeat(mean_a, rows_per_c, axis=1)[:, :, None]   # (B, M, 1)
        sa = jnp.repeat(inv_a, rows_per_c, axis=1)[:, :, None]
        mb = jnp.repeat(mean_b, rows_per_c, axis=1)[:, :, None]
        sb = jnp.repeat(inv_b, rows_per_c, axis=1)[:, :, None]

        max_rows = max(8, (_BLOCK_BUDGET_BYTES // (128 * 4)) // 8 * 8)  # mult of 8
        S = M if M <= max_rows else max_rows
        grid = (B, pl.cdiv(M, S))
        idx = lambda b, r: (b, r, 0)
        x_spec = pl.BlockSpec((None, S, 128), idx)
        v_spec = pl.BlockSpec((None, S, 1), idx)
        block_bytes = S * 128 * 4
        vec_bytes = S * 4
        out_shapes = (jax.ShapeDtypeStruct((B, M, 128), dtype_a),
                      jax.ShapeDtypeStruct((B, M, 128), dtype_b))
    else:
        # Fallback (H*W not a multiple of 128): channels on sublanes, spatial on lanes.
        xa = x_a.reshape(B, C, hw)
        xb = x_b.reshape(B, C, hw)
        ma = mean_a[:, :, None]
        sa = inv_a[:, :, None]
        mb = mean_b[:, :, None]
        sb = inv_b[:, :, None]

        t_max = max(128, (_BLOCK_BUDGET_BYTES // (C * 4)) // 128 * 128)  # mult of 128
        T = hw if hw <= t_max else t_max
        grid = (B, pl.cdiv(hw, T))
        x_spec = pl.BlockSpec((None, C, T), lambda b, s: (b, 0, s))
        v_spec = pl.BlockSpec((None, C, 1), lambda b, s: (b, 0, 0))
        block_bytes = C * T * 4
        vec_bytes = C * 4
        out_shapes = (jax.ShapeDtypeStruct((B, C, hw), dtype_a),
                      jax.ShapeDtypeStruct((B, C, hw), dtype_b))

    # Double-buffered pipeline footprint (4 x/y streams + 4 tiny vectors) + headroom.
    vmem_limit = int(2 * (4 * block_bytes + 4 * vec_bytes) + (8 << 20))

    ya, yb = pl.pallas_call(
        _norm_kernel,
        grid=grid,
        in_specs=[v_spec, v_spec, v_spec, v_spec, x_spec, x_spec],
        out_specs=(x_spec, x_spec),
        out_shape=out_shapes,
        compiler_params=pltpu.CompilerParams(
            dimension_semantics=("parallel", "parallel"),
            vmem_limit_bytes=vmem_limit),
    )(ma, sa, mb, sb, xa, xb)

    return ya.reshape(B, C, H, W), yb.reshape(B, C, H, W)


def cond_norm_forward(params, x_pair, ldj, condition_embd=None):
    """CondNorm forward (reverse=False, is_initialized=True).

    x_pair: (x_a, x_b), each (B, C, H, W) — concatenation along channels is implicit.
    ldj:    (B,) running log-determinant.
    condition_embd: (B, E) or None (plain ActNorm parameters).
    Returns ((y_a, y_b), sldj).
    """
    x_a, x_b = x_pair
    B, C, H, W = x_a.shape
    C2 = 2 * C
    hw = H * W

    mean_p = params['mean'].reshape(C2).astype(jnp.float32)
    inv_p = params['inv_std'].reshape(C2).astype(jnp.float32)

    if condition_embd is not None:
        # Tiny conditioning MLP: cheaper as one fused XLA op in the wrapper than as
        # per-batch MXU latency inside the kernel (output is only B * 2*C2 floats).
        cond = condition_embd.astype(jnp.float32)
        h = jax.nn.relu(cond @ params['w1'].T + params['b1'])          # (B, hidden)
        delta = jnp.tanh(h @ params['w2'].T + params['b2'])            # (B, 2*C2)
        mean = mean_p[None, :] + delta[:, :C2]                         # (B, C2)
        inv_std = inv_p[None, :] + delta[:, C2:]                       # (B, C2)
    else:
        mean = jnp.broadcast_to(mean_p[None, :], (B, C2))
        inv_std = jnp.broadcast_to(inv_p[None, :], (B, C2))

    # sldj += mean_over_batch( sum_over_channels(log(inv_std)) ) * H * W
    sldj = ldj.astype(jnp.float32) + jnp.mean(jnp.sum(jnp.log(inv_std), axis=1)) * float(hw)

    y_a, y_b = _apply_norm(x_a, x_b,
                           mean[:, :C], inv_std[:, :C],
                           mean[:, C:], inv_std[:, C:])
    return (y_a, y_b), sldj


# ---------------------------------------------------------------------------
# Deterministic parameter initialization (shapes follow the PyTorch module;
# Linear weights kept in nn.Linear's native (out_features, in_features) layout).
# ---------------------------------------------------------------------------
def init_params(key, num_channels, cond_size, hidden=50):
    C2 = 2 * num_channels                     # _BaseNorm doubles num_channels
    k = jax.random.split(key, 6)
    return {
        'mean': 0.1 * jax.random.normal(k[0], (C2,), jnp.float32),
        'inv_std': 1.5 + 0.1 * jax.random.normal(k[1], (C2,), jnp.float32),  # > 0 for log()
        'w1': jax.random.normal(k[2], (hidden, cond_size), jnp.float32) / jnp.sqrt(cond_size),
        'b1': 0.01 * jax.random.normal(k[3], (hidden,), jnp.float32),
        'w2': jax.random.normal(k[4], (2 * C2, hidden), jnp.float32) / jnp.sqrt(hidden),
        'b2': 0.01 * jax.random.normal(k[5], (2 * C2,), jnp.float32),
    }


# ---------------------------------------------------------------------------
# Pure-JAX reference (mirrors the PyTorch forward, reverse=False).
# ---------------------------------------------------------------------------
def reference_forward(params, x_pair, ldj, cond=None):
    x = jnp.concatenate(x_pair, axis=1)                    # (B, 2C, H, W)
    B, C2, H, W = x.shape
    if cond is not None:
        h = jax.nn.relu(cond @ params['w1'].T + params['b1'])
        d = jnp.tanh(h @ params['w2'].T + params['b2'])    # (B, 2*C2)
        mean = params['mean'][None, :] + d[:, :C2]
        inv = params['inv_std'][None, :] + d[:, C2:]
    else:
        mean = jnp.broadcast_to(params['mean'][None, :], (B, C2))
        inv = jnp.broadcast_to(params['inv_std'][None, :], (B, C2))
    y = (x - mean[:, :, None, None]) * inv[:, :, None, None]
    sldj = ldj + jnp.mean(jnp.sum(jnp.log(inv), axis=1)) * H * W
    ya, yb = jnp.split(y, 2, axis=1)
    return (ya, yb), sldj


if __name__ == "__main__":
    B, C, H, W = 2, 4, 16, 16        # per-half channels C=4 -> concatenated 2C=8
    E = 16                           # condition_embd_size

    key = jax.random.PRNGKey(0)
    kp, kx1, kx2, kc = jax.random.split(key, 4)
    params = init_params(kp, C, E)

    x_a = jax.random.normal(kx1, (B, C, H, W), jnp.float32)
    x_b = jax.random.normal(kx2, (B, C, H, W), jnp.float32)
    cond = jax.random.normal(kc, (B, E), jnp.float32)
    ldj = jnp.zeros((B,), jnp.float32)

    fwd = jax.jit(cond_norm_forward)

    # Conditioned path (H*W % 128 == 0 -> sublane-dense layout).
    (ya, yb), ldj_out = fwd(params, (x_a, x_b), ldj, cond)
    jax.block_until_ready((ya, yb, ldj_out))
    (ra, rb), rl = reference_forward(params, (x_a, x_b), ldj, cond)
    assert jnp.allclose(ya, ra, atol=1e-5, rtol=1e-5)
    assert jnp.allclose(yb, rb, atol=1e-5, rtol=1e-5)
    assert jnp.allclose(ldj_out, rl, atol=1e-5, rtol=1e-5)

    # Unconditioned path (plain ActNorm parameters through the same kernel).
    (ya0, yb0), ldj0 = fwd(params, (x_a, x_b), ldj, None)
    jax.block_until_ready((ya0, yb0, ldj0))
    (ra0, rb0), rl0 = reference_forward(params, (x_a, x_b), ldj, None)
    assert jnp.allclose(ya0, ra0, atol=1e-5, rtol=1e-5)
    assert jnp.allclose(yb0, rb0, atol=1e-5, rtol=1e-5)
    assert jnp.allclose(ldj0, rl0, atol=1e-5, rtol=1e-5)

    # Fallback layout path: H*W not a multiple of 128.
    Hs, Ws = 10, 10
    x_a2 = jax.random.normal(kx1, (B, C, Hs, Ws), jnp.float32)
    x_b2 = jax.random.normal(kx2, (B, C, Hs, Ws), jnp.float32)
    (ya2, yb2), ldj2 = fwd(params, (x_a2, x_b2), ldj, cond)
    jax.block_until_ready((ya2, yb2, ldj2))
    (ra2, rb2), rl2 = reference_forward(params, (x_a2, x_b2), ldj, cond)
    assert jnp.allclose(ya2, ra2, atol=1e-5, rtol=1e-5)
    assert jnp.allclose(yb2, rb2, atol=1e-5, rtol=1e-5)
    assert jnp.allclose(ldj2, rl2, atol=1e-5, rtol=1e-5)

    print("KERNEL_OK")
</pallas_src>

<mosaic_0001>
module attributes {stable_mosaic.version = 11 : i64} {
  func.func @_norm_kernel(%arg0: i32, %arg1: i32, %arg2: memref<1x8x1xf32, #tpu.memory_space<vmem>>, %arg3: memref<1x8x1xf32, #tpu.memory_space<vmem>>, %arg4: memref<1x8x1xf32, #tpu.memory_space<vmem>>, %arg5: memref<1x8x1xf32, #tpu.memory_space<vmem>>, %arg6: memref<1x8x128xf32, #tpu.memory_space<vmem>>, %arg7: memref<1x8x128xf32, #tpu.memory_space<vmem>>, %arg8: memref<1x8x128xf32, #tpu.memory_space<vmem>>, %arg9: memref<1x8x128xf32, #tpu.memory_space<vmem>>) attributes {dimension_semantics = [#tpu.dimension_semantics<parallel>, #tpu.dimension_semantics<parallel>], iteration_bounds = array<i64: 2, 1>, scalar_prefetch = 0 : i64, scratch_operands = 0 : i64, tpu.core_type = #tpu.core_type<tc>, window_params = [{transform_indices = @transform_0, window_bounds = array<i64: 1, 8, 1>}, {transform_indices = @transform_1, window_bounds = array<i64: 1, 8, 1>}, {transform_indices = @transform_2, window_bounds = array<i64: 1, 8, 1>}, {transform_indices = @transform_3, window_bounds = array<i64: 1, 8, 1>}, {transform_indices = @transform_4, window_bounds = array<i64: 1, 8, 128>}, {transform_indices = @transform_5, window_bounds = array<i64: 1, 8, 128>}, {transform_indices = @transform_6, window_bounds = array<i64: 1, 8, 128>}, {transform_indices = @transform_7, window_bounds = array<i64: 1, 8, 128>}]} {
    %c0 = arith.constant 0 : index
    %c0_0 = arith.constant 0 : index
    %c0_1 = arith.constant 0 : index
    %0 = vector.load %arg6[%c0, %c0_0, %c0_1] : memref<1x8x128xf32, #tpu.memory_space<vmem>>, vector<1x8x128xf32>
    %1 = vector.shape_cast %0 : vector<1x8x128xf32> to vector<8x128xf32>
    %c0_2 = arith.constant 0 : index
    %c0_3 = arith.constant 0 : index
    %c0_4 = arith.constant 0 : index
    %2 = vector.load %arg7[%c0_2, %c0_3, %c0_4] : memref<1x8x128xf32, #tpu.memory_space<vmem>>, vector<1x8x128xf32>
    %3 = vector.shape_cast %2 : vector<1x8x128xf32> to vector<8x128xf32>
    %c0_5 = arith.constant 0 : index
    %c0_6 = arith.constant 0 : index
    %c0_7 = arith.constant 0 : index
    %4 = vector.load %arg2[%c0_5, %c0_6, %c0_7] : memref<1x8x1xf32, #tpu.memory_space<vmem>>, vector<1x8x1xf32>
    %5 = vector.shape_cast %4 : vector<1x8x1xf32> to vector<8x1xf32>
    %6 = vector.broadcast %5 : vector<8x1xf32> to vector<8x128xf32>
    %7 = arith.subf %1, %6 : vector<8x128xf32>
    %c0_8 = arith.constant 0 : index
    %c0_9 = arith.constant 0 : index
    %c0_10 = arith.constant 0 : index
    %8 = vector.load %arg3[%c0_8, %c0_9, %c0_10] : memref<1x8x1xf32, #tpu.memory_space<vmem>>, vector<1x8x1xf32>
    %9 = vector.shape_cast %8 : vector<1x8x1xf32> to vector<8x1xf32>
    %10 = vector.broadcast %9 : vector<8x1xf32> to vector<8x128xf32>
    %11 = arith.mulf %7, %10 : vector<8x128xf32>
    %c0_11 = arith.constant 0 : index
    %c0_12 = arith.constant 0 : index
    %c0_13 = arith.constant 0 : index
    %12 = vector.load %arg8[%c0_11, %c0_12, %c0_13] : memref<1x8x128xf32, #tpu.memory_space<vmem>>, vector<1x8x128xf32>
    %13 = vector.shape_cast %12 : vector<1x8x128xf32> to vector<8x128xf32>
    %14 = vector.shape_cast %11 : vector<8x128xf32> to vector<1x8x128xf32>
    tpu.vector_store %arg8[%c0_11, %c0_12, %c0_13], %14 {strides = array<i32>} : memref<1x8x128xf32, #tpu.memory_space<vmem>>, vector<1x8x128xf32>,
    %c0_14 = arith.constant 0 : index
    %c0_15 = arith.constant 0 : index
    %c0_16 = arith.constant 0 : index
    %15 = vector.load %arg4[%c0_14, %c0_15, %c0_16] : memref<1x8x1xf32, #tpu.memory_space<vmem>>, vector<1x8x1xf32>
    %16 = vector.shape_cast %15 : vector<1x8x1xf32> to vector<8x1xf32>
    %17 = vector.broadcast %16 : vector<8x1xf32> to vector<8x128xf32>
    %18 = arith.subf %3, %17 : vector<8x128xf32>
    %c0_17 = arith.constant 0 : index
    %c0_18 = arith.constant 0 : index
    %c0_19 = arith.constant 0 : index
    %19 = vector.load %arg5[%c0_17, %c0_18, %c0_19] : memref<1x8x1xf32, #tpu.memory_space<vmem>>, vector<1x8x1xf32>
    %20 = vector.shape_cast %19 : vector<1x8x1xf32> to vector<8x1xf32>
    %21 = vector.broadcast %20 : vector<8x1xf32> to vector<8x128xf32>
    %22 = arith.mulf %18, %21 : vector<8x128xf32>
    %c0_20 = arith.constant 0 : index
    %c0_21 = arith.constant 0 : index
    %c0_22 = arith.constant 0 : index
    %23 = vector.load %arg9[%c0_20, %c0_21, %c0_22] : memref<1x8x128xf32, #tpu.memory_space<vmem>>, vector<1x8x128xf32>
    %24 = vector.shape_cast %23 : vector<1x8x128xf32> to vector<8x128xf32>
    %25 = vector.shape_cast %22 : vector<8x128xf32> to vector<1x8x128xf32>
    tpu.vector_store %arg9[%c0_20, %c0_21, %c0_22], %25 {strides = array<i32>} : memref<1x8x128xf32, #tpu.memory_space<vmem>>, vector<1x8x128xf32>,
    return
  }
  func.func @transform_0(%arg0: i32, %arg1: i32) -> (i32, i32, i32) {
    %c0_i32 = arith.constant 0 : i32
    %c0_i32_0 = arith.constant 0 : i32
    return %arg0, %arg1, %c0_i32 : i32, i32, i32
  }
  func.func @transform_1(%arg0: i32, %arg1: i32) -> (i32, i32, i32) {
    %c0_i32 = arith.constant 0 : i32
    %c0_i32_0 = arith.constant 0 : i32
    return %arg0, %arg1, %c0_i32 : i32, i32, i32
  }
  func.func @transform_2(%arg0: i32, %arg1: i32) -> (i32, i32, i32) {
    %c0_i32 = arith.constant 0 : i32
    %c0_i32_0 = arith.constant 0 : i32
    return %arg0, %arg1, %c0_i32 : i32, i32, i32
  }
  func.func @transform_3(%arg0: i32, %arg1: i32) -> (i32, i32, i32) {
    %c0_i32 = arith.constant 0 : i32
    %c0_i32_0 = arith.constant 0 : i32
    return %arg0, %arg1, %c0_i32 : i32, i32, i32
  }
  func.func @transform_4(%arg0: i32, %arg1: i32) -> (i32, i32, i32) {
    %c0_i32 = arith.constant 0 : i32
    %c0_i32_0 = arith.constant 0 : i32
    return %arg0, %arg1, %c0_i32 : i32, i32, i32
  }
  func.func @transform_5(%arg0: i32, %arg1: i32) -> (i32, i32, i32) {
    %c0_i32 = arith.constant 0 : i32
    %c0_i32_0 = arith.constant 0 : i32
    return %arg0, %arg1, %c0_i32 : i32, i32, i32
  }
  func.func @transform_6(%arg0: i32, %arg1: i32) -> (i32, i32, i32) {
    %c0_i32 = arith.constant 0 : i32
    %c0_i32_0 = arith.constant 0 : i32
    return %arg0, %arg1, %c0_i32 : i32, i32, i32
  }
  func.func @transform_7(%arg0: i32, %arg1: i32) -> (i32, i32, i32) {
    %c0_i32 = arith.constant 0 : i32
    %c0_i32_0 = arith.constant 0 : i32
    return %arg0, %arg1, %c0_i32 : i32, i32, i32
  }
}

</mosaic_0001>

<llo_original>
// kernel: cond_norm_forward.1
$region0: #{cond_norm_forward.1}
  #allocation0 [shape = 'u32[]', space=smem, size = 0x4, offset = 0x4, fixed_abs, tag = 'smem constant byte address 0x4 - core index']
  #allocation1 [shape = 'u32[144,128]{1,0:T(1,128)}', space=vmem, size = 0x12000, scoped, tag = 'internal scratch']
  %s0 = inlined_call_operand.vmem [shape: f32[2,8,1], index: 0, kind: input, shape index: {}]
  %s1 = inlined_call_operand.vmem [shape: f32[2,8,1], index: 1, kind: input, shape index: {}]
  %s2 = inlined_call_operand.vmem [shape: f32[2,8,1], index: 2, kind: input, shape index: {}]
  %s3 = inlined_call_operand.vmem [shape: f32[2,8,1], index: 3, kind: input, shape index: {}]
  %s4 = inlined_call_operand.vmem [shape: f32[2,8,128], index: 4, kind: input, shape index: {}]
  %s5 = inlined_call_operand.vmem [shape: f32[2,8,128], index: 5, kind: input, shape index: {}]
  %s6 = inlined_call_operand.vmem [shape: f32[2,8,128], index: 6, kind: output, shape index: {0}]
  %s7 = inlined_call_operand.vmem [shape: f32[2,8,128], index: 7, kind: output, shape index: {1}]
  %8 = xla_tuple %s6, %s7
  %s9 = sld [smem:[#allocation0]]
  $region65: #{cond_norm_forward.1} parent=0
    _
  %s11 = ssub.s32 1, %s9
  %s12 = scalar_select 0, %s11, %s9
  loop: start=0, step=1, limit=4
  $region2: #{cond_norm_forward.1} parent=0 // loop_pre_header
    _
  $region3: #{cond_norm_forward.1} parent=0 // loop_header
    %s14 = sphi 0, %s18
    %p15 = scmp.ge.s32.totalorder %s14, 4
    %s21 = sphi 0, %s33
    %s22 = sphi 0, %s29
    %s23 = sphi 0, %s21
    %s24 = sphi 0, %s22
    %s25 = sphi 0, %s23
    %s26 = sphi 0, %s24
    %s38 = sphi 0, %s40
    %s41 = sphi 0, %s38
    %s42 = sphi 0, %s41
    %s58 = sphi 0, %s42
    %s66 = sphi 0, %s68
    %s69 = sphi 0, %s66
    %s70 = sphi 0, %s69
    %s86 = sphi 0, %s70
    %s94 = sphi 0, %s96
    %s97 = sphi 0, %s94
    %s98 = sphi 0, %s97
    %s114 = sphi 0, %s98
    %s122 = sphi 0, %s124
    %s125 = sphi 0, %s122
    %s126 = sphi 0, %s125
    %s142 = sphi 0, %s126
    %s150 = sphi 0, %s152
    %s153 = sphi 0, %s150
    %s154 = sphi 0, %s153
    %s170 = sphi 0, %s154
    %s178 = sphi 0, %s180
    %s181 = sphi 0, %s178
    %s182 = sphi 0, %s181
    %s198 = sphi 0, %s182
    %s206 = sphi 0, %s208
    %s209 = sphi 0, %s206
    %s210 = sphi 0, %s209
    %s226 = sphi 0, %s210
    %s234 = sphi 0, %s236
    %s237 = sphi 0, %s234
    %s238 = sphi 0, %s237
    %s254 = sphi 0, %s238
  $region4: #{cond_norm_forward.1} parent=0 // loop_header_branch
    %17 = sbr.rel (%p15) target = $region8
  $region5: #{cond_norm_forward.1} parent=0 // loop_body
    %s19 = ssub.s32 %s14, 1
    %s20 = ssub.s32 %s14, 2
    %s27 = sadd.s32 1, %s22
    %p28 = scmp.ge.s32.totalorder %s27, 1
    %s29 = scalar_select %p28, 0, %s27
    %s30 = sadd.s32 1, %s21
    %s31 = scalar_select %p28, %s30, %s21
    %p32 = scmp.ge.s32.totalorder %s31, 2
    %s33 = scalar_select %p32, 0, %s31
    %s34 = ssub.s32 %s21, %s33
    %s35 = ssub.s32 %s22, %s29
    %s36 = sor.u32 %s34, %s35
    %p37 = scmp.eq.s32.totalorder %s36, 0
    %s39 = sadd.s32 %s38, 1
    %s40 = scalar_select %p37, %s38, %s39
    %p43 = pneg %p37
    %p44 = scmp.eq.s32.totalorder %s14, 1
    %p45 = por %p43, %p44
    %p46 = scmp.ne.s32.totalorder %s38, %s41
    %p47 = scmp.eq.s32.totalorder %s14, 0
    %p48 = por %p46, %p47
    %p49 = scmp.ne.s32.totalorder %s38, %s41
    %p50 = scmp.eq.s32.totalorder %s19, 1
    %p51 = por %p49, %p50
    %p52 = scmp.ne.s32.totalorder %s41, %s42
    %p53 = scmp.eq.s32.totalorder %s19, 0
    %p54 = por %p52, %p53
    %p55 = scmp.ne.s32.totalorder %s41, %s42
    %p56 = scmp.eq.s32.totalorder %s20, 1
    %p57 = por %p55, %p56
    %p59 = scmp.ne.s32.totalorder %s42, %s58
    %p60 = scmp.eq.s32.totalorder %s20, 0
    %p61 = por %p59, %p60
    %s62 = ssub.s32 %s21, %s33
    %s63 = ssub.s32 %s22, %s29
    %s64 = sor.u32 %s62, %s63
    %p65 = scmp.eq.s32.totalorder %s64, 0
    %s67 = sadd.s32 %s66, 1
    %s68 = scalar_select %p65, %s66, %s67
    %p71 = pneg %p65
    %p72 = scmp.eq.s32.totalorder %s14, 1
    %p73 = por %p71, %p72
    %p74 = scmp.ne.s32.totalorder %s66, %s69
    %p75 = scmp.eq.s32.totalorder %s14, 0
    %p76 = por %p74, %p75
    %p77 = scmp.ne.s32.totalorder %s66, %s69
    %p78 = scmp.eq.s32.totalorder %s19, 1
    %p79 = por %p77, %p78
    %p80 = scmp.ne.s32.totalorder %s69, %s70
    %p81 = scmp.eq.s32.totalorder %s19, 0
    %p82 = por %p80, %p81
    %p83 = scmp.ne.s32.totalorder %s69, %s70
    %p84 = scmp.eq.s32.totalorder %s20, 1
    %p85 = por %p83, %p84
    %p87 = scmp.ne.s32.totalorder %s70, %s86
    %p88 = scmp.eq.s32.totalorder %s20, 0
    %p89 = por %p87, %p88
    %s90 = ssub.s32 %s21, %s33
    %s91 = ssub.s32 %s22, %s29
    %s92 = sor.u32 %s90, %s91
    %p93 = scmp.eq.s32.totalorder %s92, 0
    %s95 = sadd.s32 %s94, 1
    %s96 = scalar_select %p93, %s94, %s95
    %p99 = pneg %p93
    %p100 = scmp.eq.s32.totalorder %s14, 1
    %p101 = por %p99, %p100
    %p102 = scmp.ne.s32.totalorder %s94, %s97
    %p103 = scmp.eq.s32.totalorder %s14, 0
    %p104 = por %p102, %p103
    %p105 = scmp.ne.s32.totalorder %s94, %s97
    %p106 = scmp.eq.s32.totalorder %s19, 1
    %p107 = por %p105, %p106
    %p108 = scmp.ne.s32.totalorder %s97, %s98
    %p109 = scmp.eq.s32.totalorder %s19, 0
    %p110 = por %p108, %p109
    %p111 = scmp.ne.s32.totalorder %s97, %s98
    %p112 = scmp.eq.s32.totalorder %s20, 1
    %p113 = por %p111, %p112
    %p115 = scmp.ne.s32.totalorder %s98, %s114
    %p116 = scmp.eq.s32.totalorder %s20, 0
    %p117 = por %p115, %p116
    %s118 = ssub.s32 %s21, %s33
    %s119 = ssub.s32 %s22, %s29
    %s120 = sor.u32 %s118, %s119
    %p121 = scmp.eq.s32.totalorder %s120, 0
    %s123 = sadd.s32 %s122, 1
    %s124 = scalar_select %p121, %s122, %s123
    %p127 = pneg %p121
    %p128 = scmp.eq.s32.totalorder %s14, 1
    %p129 = por %p127, %p128
    %p130 = scmp.ne.s32.totalorder %s122, %s125
    %p131 = scmp.eq.s32.totalorder %s14, 0
    %p132 = por %p130, %p131
    %p133 = scmp.ne.s32.totalorder %s122, %s125
    %p134 = scmp.eq.s32.totalorder %s19, 1
    %p135 = por %p133, %p134
    %p136 = scmp.ne.s32.totalorder %s125, %s126
    %p137 = scmp.eq.s32.totalorder %s19, 0
    %p138 = por %p136, %p137
    %p139 = scmp.ne.s32.totalorder %s125, %s126
    %p140 = scmp.eq.s32.totalorder %s20, 1
    %p141 = por %p139, %p140
    %p143 = scmp.ne.s32.totalorder %s126, %s142
    %p144 = scmp.eq.s32.totalorder %s20, 0
    %p145 = por %p143, %p144
    %s146 = ssub.s32 %s21, %s33
    %s147 = ssub.s32 %s22, %s29
    %s148 = sor.u32 %s146, %s147
    %p149 = scmp.eq.s32.totalorder %s148, 0
    %s151 = sadd.s32 %s150, 1
    %s152 = scalar_select %p149, %s150, %s151
    %p155 = pneg %p149
    %p156 = scmp.eq.s32.totalorder %s14, 1
    %p157 = por %p155, %p156
    %p158 = scmp.ne.s32.totalorder %s150, %s153
    %p159 = scmp.eq.s32.totalorder %s14, 0
    %p160 = por %p158, %p159
    %p161 = scmp.ne.s32.totalorder %s150, %s153
    %p162 = scmp.eq.s32.totalorder %s19, 1
    %p163 = por %p161, %p162
    %p164 = scmp.ne.s32.totalorder %s153, %s154
    %p165 = scmp.eq.s32.totalorder %s19, 0
    %p166 = por %p164, %p165
    %p167 = scmp.ne.s32.totalorder %s153, %s154
    %p168 = scmp.eq.s32.totalorder %s20, 1
    %p169 = por %p167, %p168
    %p171 = scmp.ne.s32.totalorder %s154, %s170
    %p172 = scmp.eq.s32.totalorder %s20, 0
    %p173 = por %p171, %p172
    %s174 = ssub.s32 %s21, %s33
    %s175 = ssub.s32 %s22, %s29
    %s176 = sor.u32 %s174, %s175
    %p177 = scmp.eq.s32.totalorder %s176, 0
    %s179 = sadd.s32 %s178, 1
    %s180 = scalar_select %p177, %s178, %s179
    %p183 = pneg %p177
    %p184 = scmp.eq.s32.totalorder %s14, 1
    %p185 = por %p183, %p184
    %p186 = scmp.ne.s32.totalorder %s178, %s181
    %p187 = scmp.eq.s32.totalorder %s14, 0
    %p188 = por %p186, %p187
    %p189 = scmp.ne.s32.totalorder %s178, %s181
    %p190 = scmp.eq.s32.totalorder %s19, 1
    %p191 = por %p189, %p190
    %p192 = scmp.ne.s32.totalorder %s181, %s182
    %p193 = scmp.eq.s32.totalorder %s19, 0
    %p194 = por %p192, %p193
    %p195 = scmp.ne.s32.totalorder %s181, %s182
    %p196 = scmp.eq.s32.totalorder %s20, 1
    %p197 = por %p195, %p196
    %p199 = scmp.ne.s32.totalorder %s182, %s198
    %p200 = scmp.eq.s32.totalorder %s20, 0
    %p201 = por %p199, %p200
    %s202 = ssub.s32 %s21, %s33
    %s203 = ssub.s32 %s22, %s29
    %s204 = sor.u32 %s202, %s203
    %p205 = scmp.eq.s32.totalorder %s204, 0
    %s207 = sadd.s32 %s206, 1
    %s208 = scalar_select %p205, %s206, %s207
    %p211 = pneg %p205
    %p212 = scmp.eq.s32.totalorder %s14, 1
    %p213 = por %p211, %p212
    %p214 = scmp.ne.s32.totalorder %s206, %s209
    %p215 = scmp.eq.s32.totalorder %s14, 0
    %p216 = por %p214, %p215
    %p217 = scmp.ne.s32.totalorder %s206, %s209
    %p218 = scmp.eq.s32.totalorder %s19, 1
    %p219 = por %p217, %p218
    %p220 = scmp.ne.s32.totalorder %s209, %s210
    %p221 = scmp.eq.s32.totalorder %s19, 0
    %p222 = por %p220, %p221
    %p223 = scmp.ne.s32.totalorder %s209, %s210
    %p224 = scmp.eq.s32.totalorder %s20, 1
    %p225 = por %p223, %p224
    %p227 = scmp.ne.s32.totalorder %s210, %s226
    %p228 = scmp.eq.s32.totalorder %s20, 0
    %p229 = por %p227, %p228
    %s230 = ssub.s32 %s21, %s33
    %s231 = ssub.s32 %s22, %s29
    %s232 = sor.u32 %s230, %s231
    %p233 = scmp.eq.s32.totalorder %s232, 0
    %s235 = sadd.s32 %s234, 1
    %s236 = scalar_select %p233, %s234, %s235
    %p239 = pneg %p233
    %p240 = scmp.eq.s32.totalorder %s14, 1
    %p241 = por %p239, %p240
    %p242 = scmp.ne.s32.totalorder %s234, %s237
    %p243 = scmp.eq.s32.totalorder %s14, 0
    %p244 = por %p242, %p243
    %p245 = scmp.ne.s32.totalorder %s234, %s237
    %p246 = scmp.eq.s32.totalorder %s19, 1
    %p247 = por %p245, %p246
    %p248 = scmp.ne.s32.totalorder %s237, %s238
    %p249 = scmp.eq.s32.totalorder %s19, 0
    %p250 = por %p248, %p249
    %p251 = scmp.ne.s32.totalorder %s237, %s238
    %p252 = scmp.eq.s32.totalorder %s20, 1
    %p253 = por %p251, %p252
    %p255 = scmp.ne.s32.totalorder %s238, %s254
    %p256 = scmp.eq.s32.totalorder %s20, 0
    %p257 = por %p255, %p256
    %p258 = scmp.le.s32.totalorder 1, %s14
    %p259 = scmp.lt.s32.totalorder %s14, 3
    %p260 = pnand %p258, %p259
    %p261 = pneg %p260
    // Predicated region
    $region9: #{cond_norm_forward.1} parent=5 // pred_check
      _
    $region10: #{cond_norm_forward.1} parent=5 // pred_check_branch
      %263 = sbr.rel (%p260) target = $region12
    $region11: #{cond_norm_forward.1} parent=5 // pred_region
      %s264 = ssub.s32 %s14, 1
    $region12: #{cond_norm_forward.1} parent=5 // pred_fallthru
      _
    %p265 = scmp.lt.s32.totalorder %s14, 2
    // Predicated region
    $region13: #{cond_norm_forward.1} parent=5 // pred_check
      %p266 = pneg %p265
    $region14: #{cond_norm_forward.1} parent=5 // pred_check_branch
      %268 = sbr.rel (%p266) target = $region16
    $region15: #{cond_norm_forward.1} parent=5 // pred_region
      // Predicated region
      $region17: #{cond_norm_forward.1} parent=15 // pred_check
        %p269 = pneg %p48
      $region18: #{cond_norm_forward.1} parent=15 // pred_check_branch
        %271 = sbr.rel (%p269) target = $region20
      $region19: #{cond_norm_forward.1} parent=15 // pred_region
        %p272 = scmp.lt.s32.totalorder %s21, 1
        %s273 = scalar_select %p272, %s21, 1
        %p274 = scmp.lt.s32.totalorder %s22, 0
        %s275 = scalar_select %p274, %s22, 0
        %s276 = sadd.s32 %s275, %s273
        %s277 = smul.addr %s276, 8
        %s278 = scalar_lea.vmem %s0, %s277
      $region20: #{cond_norm_forward.1} parent=15 // pred_fallthru
        _
      // Predicated region
      $region21: #{cond_norm_forward.1} parent=15 // pred_check
        %p279 = pneg %p76
      $region22: #{cond_norm_forward.1} parent=15 // pred_check_branch
        %281 = sbr.rel (%p279) target = $region24
      $region23: #{cond_norm_forward.1} parent=15 // pred_region
        %p282 = scmp.lt.s32.totalorder %s21, 1
        %s283 = scalar_select %p282, %s21, 1
        %p284 = scmp.lt.s32.totalorder %s22, 0
        %s285 = scalar_select %p284, %s22, 0
        %s286 = sadd.s32 %s285, %s283
        %s287 = smul.addr %s286, 8
        %s288 = scalar_lea.vmem %s1, %s287
      $region24: #{cond_norm_forward.1} parent=15 // pred_fallthru
        _
      // Predicated region
      $region25: #{cond_norm_forward.1} parent=15 // pred_check
        %p289 = pneg %p104
      $region26: #{cond_norm_forward.1} parent=15 // pred_check_branch
        %291 = sbr.rel (%p289) target = $region28
      $region27: #{cond_norm_forward.1} parent=15 // pred_region
        %p292 = scmp.lt.s32.totalorder %s21, 1
        %s293 = scalar_select %p292, %s21, 1
        %p294 = scmp.lt.s32.totalorder %s22, 0
        %s295 = scalar_select %p294, %s22, 0
        %s296 = sadd.s32 %s295, %s293
        %s297 = smul.addr %s296, 8
        %s298 = scalar_lea.vmem %s2, %s297
      $region28: #{cond_norm_forward.1} parent=15 // pred_fallthru
        _
      // Predicated region
      $region29: #{cond_norm_forward.1} parent=15 // pred_check
        %p299 = pneg %p132
      $region30: #{cond_norm_forward.1} parent=15 // pred_check_branch
        %301 = sbr.rel (%p299) target = $region32
      $region31: #{cond_norm_forward.1} parent=15 // pred_region
        %p302 = scmp.lt.s32.totalorder %s21, 1
        %s303 = scalar_select %p302, %s21, 1
        %p304 = scmp.lt.s32.totalorder %s22, 0
        %s305 = scalar_select %p304, %s22, 0
        %s306 = sadd.s32 %s305, %s303
        %s307 = smul.addr %s306, 8
        %s308 = scalar_lea.vmem %s3, %s307
      $region32: #{cond_norm_forward.1} parent=15 // pred_fallthru
        _
      // Predicated region
      $region33: #{cond_norm_forward.1} parent=15 // pred_check
        %p309 = pneg %p160
      $region34: #{cond_norm_forward.1} parent=15 // pred_check_branch
        %311 = sbr.rel (%p309) target = $region36
      $region35: #{cond_norm_forward.1} parent=15 // pred_region
        %p312 = scmp.lt.s32.totalorder %s21, 1
        %s313 = scalar_select %p312, %s21, 1
        %p314 = scmp.lt.s32.totalorder %s22, 0
        %s315 = scalar_select %p314, %s22, 0
        %s316 = sadd.s32 %s315, %s313
        %s317 = smul.addr %s316, 8
        %s318 = scalar_lea.vmem %s4, %s317
      $region36: #{cond_norm_forward.1} parent=15 // pred_fallthru
        _
      // Predicated region
      $region37: #{cond_norm_forward.1} parent=15 // pred_check
        %p319 = pneg %p188
      $region38: #{cond_norm_forward.1} parent=15 // pred_check_branch
        %321 = sbr.rel (%p319) target = $region40
      $region39: #{cond_norm_forward.1} parent=15 // pred_region
        %p322 = scmp.lt.s32.totalorder %s21, 1
        %s323 = scalar_select %p322, %s21, 1
        %p324 = scmp.lt.s32.totalorder %s22, 0
        %s325 = scalar_select %p324, %s22, 0
        %s326 = sadd.s32 %s325, %s323
        %s327 = smul.addr %s326, 8
        %s328 = scalar_lea.vmem %s5, %s327
      $region40: #{cond_norm_forward.1} parent=15 // pred_fallthru
        _
    $region16: #{cond_norm_forward.1} parent=5 // pred_fallthru
      _
    %p329 = scmp.le.s32.totalorder 1, %s14
    %p330 = scmp.lt.s32.totalorder %s14, 3
    %p331 = pnand %p329, %p330
    %p332 = pneg %p331
    // Predicated region
    $region41: #{cond_norm_forward.1} parent=5 // pred_check
      _
    $region42: #{cond_norm_forward.1} parent=5 // pred_check_branch
      %334 = sbr.rel (%p331) target = $region44
    $region43: #{cond_norm_forward.1} parent=5 // pred_region
      %s335 = ssub.s32 %s14, 1
      %p336 = scmp.lt.s32.totalorder %s23, 1
      %s337 = scalar_select %p336, %s23, 1
      %p338 = scmp.lt.s32.totalorder %s24, 0
      %s339 = scalar_select %p338, %s24, 0
      %s340 = sadd.s32 %s339, %s337
      %s341 = smul.addr %s340, 8
      %s342 = scalar_lea.vmem %s0, %s341
      %p343 = pneg %p54
      %p344 = pneg %p51
      %p345 = scmp.lt.s32.totalorder %s23, 1
      %s346 = scalar_select %p345, %s23, 1
      %p347 = scmp.lt.s32.totalorder %s24, 0
      %s348 = scalar_select %p347, %s24, 0
      %s349 = sadd.s32 %s348, %s346
      %s350 = smul.addr %s349, 8
      %s351 = scalar_lea.vmem %s1, %s350
      %p352 = pneg %p82
      %p353 = pneg %p79
      %p354 = scmp.lt.s32.totalorder %s23, 1
      %s355 = scalar_select %p354, %s23, 1
      %p356 = scmp.lt.s32.totalorder %s24, 0
      %s357 = scalar_select %p356, %s24, 0
      %s358 = sadd.s32 %s357, %s355
      %s359 = smul.addr %s358, 8
      %s360 = scalar_lea.vmem %s2, %s359
      %p361 = pneg %p110
      %p362 = pneg %p107
      %p363 = scmp.lt.s32.totalorder %s23, 1
      %s364 = scalar_select %p363, %s23, 1
      %p365 = scmp.lt.s32.totalorder %s24, 0
      %s366 = scalar_select %p365, %s24, 0
      %s367 = sadd.s32 %s366, %s364
      %s368 = smul.addr %s367, 8
      %s369 = scalar_lea.vmem %s3, %s368
      %p370 = pneg %p138
      %p371 = pneg %p135
      %p372 = scmp.lt.s32.totalorder %s23, 1
      %s373 = scalar_select %p372, %s23, 1
      %p374 = scmp.lt.s32.totalorder %s24, 0
      %s375 = scalar_select %p374, %s24, 0
      %s376 = sadd.s32 %s375, %s373
      %s377 = smul.addr %s376, 8
      %s378 = scalar_lea.vmem %s4, %s377
      %p379 = pneg %p166
      %p380 = pneg %p163
      %p381 = scmp.lt.s32.totalorder %s23, 1
      %s382 = scalar_select %p381, %s23, 1
      %p383 = scmp.lt.s32.totalorder %s24, 0
      %s384 = scalar_select %p383, %s24, 0
      %s385 = sadd.s32 %s384, %s382
      %s386 = smul.addr %s385, 8
      %s387 = scalar_lea.vmem %s5, %s386
      %p388 = pneg %p194
      %p389 = pneg %p191
      %p390 = pneg %p222
      %p391 = pneg %p219
      %p392 = scmp.lt.s32.totalorder %s23, 1
      %s393 = scalar_select %p392, %s23, 1
      %p394 = scmp.lt.s32.totalorder %s24, 0
      %s395 = scalar_select %p394, %s24, 0
      %s396 = sadd.s32 %s395, %s393
      %s397 = smul.addr %s396, 8
      %s398 = scalar_lea.vmem %s6, %s397
      %p399 = pneg %p250
      %p400 = pneg %p247
      %p401 = scmp.lt.s32.totalorder %s23, 1
      %s402 = scalar_select %p401, %s23, 1
      %p403 = scmp.lt.s32.totalorder %s24, 0
      %s404 = scalar_select %p403, %s24, 0
      %s405 = sadd.s32 %s404, %s402
      %s406 = smul.addr %s405, 8
      %s407 = scalar_lea.vmem %s7, %s406
      %p408 = scmp.lt.s32.totalorder %s23, 1
      %s409 = scalar_select %p408, %s23, 1
      %p410 = scmp.lt.s32.totalorder %s24, 0
      %s411 = scalar_select %p410, %s24, 0
      %s412 = sadd.s32 %s411, %s409
      %s413 = smul.addr %s412, 8
      %s414 = scalar_lea.vmem %s0, %s413
      %p415 = scmp.lt.s32.totalorder %s23, 1
      %s416 = scalar_select %p415, %s23, 1
      %p417 = scmp.lt.s32.totalorder %s24, 0
      %s418 = scalar_select %p417, %s24, 0
      %s419 = sadd.s32 %s418, %s416
      %s420 = smul.addr %s419, 8
      %s421 = scalar_lea.vmem %s1, %s420
      %p422 = scmp.lt.s32.totalorder %s23, 1
      %s423 = scalar_select %p422, %s23, 1
      %p424 = scmp.lt.s32.totalorder %s24, 0
      %s425 = scalar_select %p424, %s24, 0
      %s426 = sadd.s32 %s425, %s423
      %s427 = smul.addr %s426, 8
      %s428 = scalar_lea.vmem %s2, %s427
      %p429 = scmp.lt.s32.totalorder %s23, 1
      %s430 = scalar_select %p429, %s23, 1
      %p431 = scmp.lt.s32.totalorder %s24, 0
      %s432 = scalar_select %p431, %s24, 0
      %s433 = sadd.s32 %s432, %s430
      %s434 = smul.addr %s433, 8
      %s435 = scalar_lea.vmem %s3, %s434
      %p436 = scmp.lt.s32.totalorder %s23, 1
      %s437 = scalar_select %p436, %s23, 1
      %p438 = scmp.lt.s32.totalorder %s24, 0
      %s439 = scalar_select %p438, %s24, 0
      %s440 = sadd.s32 %s439, %s437
      %s441 = smul.addr %s440, 8
      %s442 = scalar_lea.vmem %s4, %s441
      %p443 = scmp.lt.s32.totalorder %s23, 1
      %s444 = scalar_select %p443, %s23, 1
      %p445 = scmp.lt.s32.totalorder %s24, 0
      %s446 = scalar_select %p445, %s24, 0
      %s447 = sadd.s32 %s446, %s444
      %s448 = smul.addr %s447, 8
      %s449 = scalar_lea.vmem %s5, %s448
      %p450 = scmp.lt.s32.totalorder %s23, 1
      %s451 = scalar_select %p450, %s23, 1
      %p452 = scmp.lt.s32.totalorder %s24, 0
      %s453 = scalar_select %p452, %s24, 0
      %s454 = sadd.s32 %s453, %s451
      %s455 = smul.addr %s454, 8
      %s456 = scalar_lea.vmem %s6, %s455
      %p457 = scmp.lt.s32.totalorder %s23, 1
      %s458 = scalar_select %p457, %s23, 1
      %p459 = scmp.lt.s32.totalorder %s24, 0
      %s460 = scalar_select %p459, %s24, 0
      %s461 = sadd.s32 %s460, %s458
      %s462 = smul.addr %s461, 8
      %s463 = scalar_lea.vmem %s7, %s462
      %v464 = vld [vmem:[%s442] sm:$0xff]
      %v465 = vld [vmem:[%s449] sm:$0xff]
      %v466 = vld [vmem:[%s414] sm:$0xff]
      %468 = vset.pattern.permute.xlu0 0
      %469 = vperm.xlu0 %468, %v466
      %v470 = vpop.permute.xlu0 %469
      %v472 = vsub.f32 %v464, %v470
      %v473 = vld [vmem:[%s421] sm:$0xff]
      %475 = vset.pattern.permute.xlu0 0
      %476 = vperm.xlu0 %475, %v473
      %v477 = vpop.permute.xlu0 %476
      %v479 = vmul.f32 %v472, %v477
      %480 = vst [vmem:[%s456] sm:$0xff] %v479
      %v481 = vld [vmem:[%s428] sm:$0xff]
      %483 = vset.pattern.permute.xlu0 0
      %484 = vperm.xlu0 %483, %v481
      %v485 = vpop.permute.xlu0 %484
      %v487 = vsub.f32 %v465, %v485
      %v488 = vld [vmem:[%s435] sm:$0xff]
      %490 = vset.pattern.permute.xlu0 0
      %491 = vperm.xlu0 %490, %v488
      %v492 = vpop.permute.xlu0 %491
      %v494 = vmul.f32 %v487, %v492
      %495 = vst [vmem:[%s463] sm:$0xff] %v494
      %p496 = scmp.lt.s32.totalorder %s23, 1
      %s497 = scalar_select %p496, %s23, 1
      %p498 = scmp.lt.s32.totalorder %s24, 0
      %s499 = scalar_select %p498, %s24, 0
      %s500 = sadd.s32 %s499, %s497
      %s501 = smul.addr %s500, 8
      %s502 = scalar_lea.vmem %s6, %s501
      %p503 = scmp.lt.s32.totalorder %s23, 1
      %s504 = scalar_select %p503, %s23, 1
      %p505 = scmp.lt.s32.totalorder %s24, 0
      %s506 = scalar_select %p505, %s24, 0
      %s507 = sadd.s32 %s506, %s504
      %s508 = smul.addr %s507, 8
      %s509 = scalar_lea.vmem %s7, %s508
      // Predicated region
      $region45: #{cond_norm_forward.1} parent=43 // pred_check
        %p510 = pneg %p219
      $region46: #{cond_norm_forward.1} parent=43 // pred_check_branch
        %512 = sbr.rel (%p510) target = $region48
      $region47: #{cond_norm_forward.1} parent=43 // pred_region
        _
      $region48: #{cond_norm_forward.1} parent=43 // pred_fallthru
        _
      // Predicated region
      $region49: #{cond_norm_forward.1} parent=43 // pred_check
        %p513 = pneg %p247
      $region50: #{cond_norm_forward.1} parent=43 // pred_check_branch
        %515 = sbr.rel (%p513) target = $region52
      $region51: #{cond_norm_forward.1} parent=43 // pred_region
        _
      $region52: #{cond_norm_forward.1} parent=43 // pred_fallthru
        _
    $region44: #{cond_norm_forward.1} parent=5 // pred_fallthru
      _
    %p516 = scmp.le.s32.totalorder 2, %s14
    // Predicated region
    $region53: #{cond_norm_forward.1} parent=5 // pred_check
      %p517 = pneg %p516
    $region54: #{cond_norm_forward.1} parent=5 // pred_check_branch
      %519 = sbr.rel (%p517) target = $region56
    $region55: #{cond_norm_forward.1} parent=5 // pred_region
      %s520 = ssub.s32 %s14, 2
      // Predicated region
      $region57: #{cond_norm_forward.1} parent=55 // pred_check
        %p521 = pneg %p225
      $region58: #{cond_norm_forward.1} parent=55 // pred_check_branch
        %523 = sbr.rel (%p521) target = $region60
      $region59: #{cond_norm_forward.1} parent=55 // pred_region
        %p524 = scmp.lt.s32.totalorder %s25, 1
        %s525 = scalar_select %p524, %s25, 1
        %p526 = scmp.lt.s32.totalorder %s26, 0
        %s527 = scalar_select %p526, %s26, 0
        %s528 = sadd.s32 %s527, %s525
        %s529 = smul.addr %s528, 8
        %s530 = scalar_lea.vmem %s6, %s529
      $region60: #{cond_norm_forward.1} parent=55 // pred_fallthru
        _
      // Predicated region
      $region61: #{cond_norm_forward.1} parent=55 // pred_check
        %p531 = pneg %p253
      $region62: #{cond_norm_forward.1} parent=55 // pred_check_branch
        %533 = sbr.rel (%p531) target = $region64
      $region63: #{cond_norm_forward.1} parent=55 // pred_region
        %p534 = scmp.lt.s32.totalorder %s25, 1
        %s535 = scalar_select %p534, %s25, 1
        %p536 = scmp.lt.s32.totalorder %s26, 0
        %s537 = scalar_select %p536, %s26, 0
        %s538 = sadd.s32 %s537, %s535
        %s539 = smul.addr %s538, 8
        %s540 = scalar_lea.vmem %s7, %s539
      $region64: #{cond_norm_forward.1} parent=55 // pred_fallthru
        _
    $region56: #{cond_norm_forward.1} parent=5 // pred_fallthru
      _
  $region6: #{cond_norm_forward.1} parent=0 // loop_footer
    %s18 = sadd.s32 1, %s14
  $region7: #{cond_norm_forward.1} parent=0 // loop_footer_branch
    %13 = sbr.rel target = $region3
  $region8: #{cond_norm_forward.1} parent=0 // loop_exit
    _

</llo_original>
